<compile_context>
chip_gen: v5e
topology: v5e:2x2
jax: 0.10.0
libtpu: 0.0.40
codegen_flags: <defaults>
</compile_context>

<pallas_src>
import jax
import jax.numpy as jnp
from jax.experimental import pallas as pl
from jax.experimental.pallas import tpu as pltpu

IN_DIM = 28 * 28
H1, H2, H3 = 128, 256, 128
OUT_DIM = 10
OUT_PAD = 128  # lane-dense padded width of the final layer


def mlp_kernel(x_ref, w1_ref, b1_ref, w2_ref, b2_ref, w3_ref, b3_ref,
               w4_ref, b4_ref, o_ref):
    # x/weights are bf16; every matmul accumulates in f32 on the MXU; bias add
    # and ReLU happen in f32, then re-pack to bf16 for the next MXU pass.
    h = jnp.dot(x_ref[...], w1_ref[...],
                preferred_element_type=jnp.float32) + b1_ref[...]
    h = jnp.maximum(h, 0.0).astype(jnp.bfloat16)
    h = jnp.dot(h, w2_ref[...],
                preferred_element_type=jnp.float32) + b2_ref[...]
    h = jnp.maximum(h, 0.0).astype(jnp.bfloat16)
    h = jnp.dot(h, w3_ref[...],
                preferred_element_type=jnp.float32) + b3_ref[...]
    h = jnp.maximum(h, 0.0).astype(jnp.bfloat16)
    out = jnp.dot(h, w4_ref[...],
                  preferred_element_type=jnp.float32) + b4_ref[...]
    o_ref[...] = out.astype(o_ref.dtype)


def _pick_block_b(batch):
    # Large M tiles keep the 128/256-wide MXU busy and amortize the ~0.35 us
    # per-grid-step overhead.  Cap at 512 and keep >= 2 grid tiles when the
    # batch allows (v7x has 2 TensorCores sharded over the "parallel" axis).
    # Multiple of 16 for bf16 sublane packing.
    half = -(-batch // 2)          # cdiv(batch, 2)
    bb = -(-half // 16) * 16       # round up to a multiple of 16
    return max(16, min(512, bb))


@jax.jit
def neural_net_forward(x, params):
    """x: (B, 1, 28, 28) or (B, 784). Returns (B, 10) f32 logits."""
    x2d = x.reshape(-1, IN_DIM).astype(jnp.bfloat16)
    B = x2d.shape[0]
    block_b = _pick_block_b(B)
    grid_b = pl.cdiv(B, block_b)   # ragged last tile handled by Pallas, no pad copy

    (w1, b1), (w2, b2), (w3, b3), (w4, b4) = params

    # bf16 weights (half the DMA bytes, double MXU issue rate); f32 biases.
    w1, w2, w3, w4 = (w.astype(jnp.bfloat16) for w in (w1, w2, w3, w4))
    b1, b2, b3, b4 = (b.astype(jnp.float32) for b in (b1, b2, b3, b4))
    # Pad the last layer to 128 output columns -> unmasked lane-dense stores.
    w4p = jnp.zeros((H3, OUT_PAD), jnp.bfloat16).at[:, :OUT_DIM].set(w4)
    b4p = jnp.zeros((1, OUT_PAD), jnp.float32).at[:, :OUT_DIM].set(b4)

    def full_spec(shape):
        # Whole-array block, same block index for every grid step
        # (weights/biases stay resident in VMEM across the batch grid).
        return pl.BlockSpec(shape, lambda i: (0, 0))

    out = pl.pallas_call(
        mlp_kernel,
        out_shape=jax.ShapeDtypeStruct((B, OUT_PAD), jnp.float32),
        grid_spec=pltpu.PrefetchScalarGridSpec(
            num_scalar_prefetch=0,
            grid=(grid_b,),
            in_specs=[
                pl.BlockSpec((block_b, IN_DIM), lambda i: (i, 0)),
                full_spec(w1.shape), full_spec(b1.shape),
                full_spec(w2.shape), full_spec(b2.shape),
                full_spec(w3.shape), full_spec(b3.shape),
                full_spec(w4p.shape), full_spec(b4p.shape),
            ],
            out_specs=pl.BlockSpec((block_b, OUT_PAD), lambda i: (i, 0)),
        ),
        compiler_params=pltpu.CompilerParams(
            dimension_semantics=("parallel",)),
    )(x2d, w1, b1, w2, b2, w3, b3, w4p, b4p)

    # TODO(synk): if the real pipeline delivers uint8 MNIST pixels, DMA them as
    # uint8 and cast/normalize inside the kernel to cut input HBM traffic 4x.
    return out[:, :OUT_DIM]


def init_params(key):
    """Deterministic init mirroring nn.Linear's U(-1/sqrt(fan_in), +1/sqrt(fan_in)).

    Weights are stored transposed relative to PyTorch: (in_features, out_features).
    """
    dims = [(IN_DIM, H1), (H1, H2), (H2, H3), (H3, OUT_DIM)]
    params = []
    for (fan_in, fan_out) in dims:
        key, kw, kb = jax.random.split(key, 3)
        bound = 1.0 / jnp.sqrt(jnp.float32(fan_in))
        w = jax.random.uniform(kw, (fan_in, fan_out), jnp.float32,
                               minval=-bound, maxval=bound)
        b = jax.random.uniform(kb, (1, fan_out), jnp.float32,
                               minval=-bound, maxval=bound)
        params.append((w, b))
    return params


def reference_forward(x, params, compute_dtype=jnp.float32):
    """Pure-JAX reference. compute_dtype=bf16 mirrors the kernel's precision."""
    x2d = x.reshape(-1, IN_DIM).astype(compute_dtype)
    (w1, b1), (w2, b2), (w3, b3), (w4, b4) = params

    def dense(h, w, b, relu):
        y = jnp.dot(h, w.astype(compute_dtype),
                    preferred_element_type=jnp.float32) + b.astype(jnp.float32)
        if relu:
            y = jnp.maximum(y, 0.0).astype(compute_dtype)
        return y

    h = dense(x2d, w1, b1, True)
    h = dense(h, w2, b2, True)
    h = dense(h, w3, b3, True)
    return dense(h, w4, b4, False)


if __name__ == "__main__":
    key = jax.random.PRNGKey(0)
    kp, kx = jax.random.split(key)
    params = init_params(kp)

    # Small MNIST-like batch: (B, 1, 28, 28).
    x = jax.random.normal(kx, (8, 1, 28, 28), jnp.float32)

    out = neural_net_forward(x, params)
    out = jax.block_until_ready(out)
    assert out.shape == (8, 10), out.shape

    # Tight check against a bf16-precision reference (same compute recipe).
    ref_bf16 = reference_forward(x, params, jnp.bfloat16)
    assert jnp.allclose(out, ref_bf16, atol=1e-2, rtol=1e-2), \
        "mismatch vs bf16 reference"

    # Loose check against the f32 PyTorch-semantics reference.
    ref_f32 = reference_forward(x, params, jnp.float32)
    assert jnp.allclose(out, ref_f32, atol=5e-2, rtol=5e-2), \
        "mismatch vs f32 reference"

    print("KERNEL_OK")
</pallas_src>

<mosaic_0001>
module attributes {stable_mosaic.version = 11 : i64} {
  func.func @mlp_kernel(%arg0: i32, %arg1: memref<16x784xbf16, #tpu.memory_space<vmem>>, %arg2: memref<784x128xbf16, #tpu.memory_space<vmem>>, %arg3: memref<1x128xf32, #tpu.memory_space<vmem>>, %arg4: memref<128x256xbf16, #tpu.memory_space<vmem>>, %arg5: memref<1x256xf32, #tpu.memory_space<vmem>>, %arg6: memref<256x128xbf16, #tpu.memory_space<vmem>>, %arg7: memref<1x128xf32, #tpu.memory_space<vmem>>, %arg8: memref<128x128xbf16, #tpu.memory_space<vmem>>, %arg9: memref<1x128xf32, #tpu.memory_space<vmem>>, %arg10: memref<16x128xf32, #tpu.memory_space<vmem>>) attributes {dimension_semantics = [#tpu.dimension_semantics<parallel>], iteration_bounds = array<i64: 1>, scalar_prefetch = 0 : i64, scratch_operands = 0 : i64, tpu.core_type = #tpu.core_type<tc>, window_params = [{transform_indices = @transform_0, window_bounds = array<i64: 16, 784>}, {pipeline_mode = #tpu.pipeline_mode<synchronous>, transform_indices = @transform_1, window_bounds = array<i64: 784, 128>}, {pipeline_mode = #tpu.pipeline_mode<synchronous>, transform_indices = @transform_2, window_bounds = array<i64: 1, 128>}, {pipeline_mode = #tpu.pipeline_mode<synchronous>, transform_indices = @transform_3, window_bounds = array<i64: 128, 256>}, {pipeline_mode = #tpu.pipeline_mode<synchronous>, transform_indices = @transform_4, window_bounds = array<i64: 1, 256>}, {pipeline_mode = #tpu.pipeline_mode<synchronous>, transform_indices = @transform_5, window_bounds = array<i64: 256, 128>}, {pipeline_mode = #tpu.pipeline_mode<synchronous>, transform_indices = @transform_6, window_bounds = array<i64: 1, 128>}, {pipeline_mode = #tpu.pipeline_mode<synchronous>, transform_indices = @transform_7, window_bounds = array<i64: 128, 128>}, {pipeline_mode = #tpu.pipeline_mode<synchronous>, transform_indices = @transform_8, window_bounds = array<i64: 1, 128>}, {transform_indices = @transform_9, window_bounds = array<i64: 16, 128>}]} {
    %c0 = arith.constant 0 : index
    %c0_0 = arith.constant 0 : index
    %0 = vector.load %arg1[%c0, %c0_0] : memref<16x784xbf16, #tpu.memory_space<vmem>>, vector<16x784xbf16>
    %c0_1 = arith.constant 0 : index
    %c0_2 = arith.constant 0 : index
    %1 = vector.load %arg2[%c0_1, %c0_2] : memref<784x128xbf16, #tpu.memory_space<vmem>>, vector<784x128xbf16>
    %cst = arith.constant dense<0.000000e+00> : vector<16x128xf32>
    %2 = tpu.matmul %0, %1, %cst {dimension_numbers = #tpu.dot_dimension_numbers<[1], [0], [0], [1], [0, 0, 1, 1], [], []>} : vector<16x784xbf16>, vector<784x128xbf16>, vector<16x128xf32> -> vector<16x128xf32>
    %c0_3 = arith.constant 0 : index
    %c0_4 = arith.constant 0 : index
    %3 = vector.load %arg3[%c0_3, %c0_4] : memref<1x128xf32, #tpu.memory_space<vmem>>, vector<1x128xf32>
    %4 = vector.broadcast %3 : vector<1x128xf32> to vector<16x128xf32>
    %5 = arith.addf %2, %4 : vector<16x128xf32>
    %cst_5 = arith.constant 0.000000e+00 : f32
    %6 = vector.broadcast %cst_5 : f32 to vector<16x128xf32>
    %7 = arith.maximumf %5, %6 : vector<16x128xf32>
    %8 = arith.truncf %7 : vector<16x128xf32> to vector<16x128xbf16>
    %c0_6 = arith.constant 0 : index
    %c0_7 = arith.constant 0 : index
    %9 = vector.load %arg4[%c0_6, %c0_7] : memref<128x256xbf16, #tpu.memory_space<vmem>>, vector<128x256xbf16>
    %cst_8 = arith.constant dense<0.000000e+00> : vector<16x256xf32>
    %10 = tpu.matmul %8, %9, %cst_8 {dimension_numbers = #tpu.dot_dimension_numbers<[1], [0], [0], [1], [0, 0, 1, 1], [], []>} : vector<16x128xbf16>, vector<128x256xbf16>, vector<16x256xf32> -> vector<16x256xf32>
    %c0_9 = arith.constant 0 : index
    %c0_10 = arith.constant 0 : index
    %11 = vector.load %arg5[%c0_9, %c0_10] : memref<1x256xf32, #tpu.memory_space<vmem>>, vector<1x256xf32>
    %12 = vector.broadcast %11 : vector<1x256xf32> to vector<16x256xf32>
    %13 = arith.addf %10, %12 : vector<16x256xf32>
    %cst_11 = arith.constant 0.000000e+00 : f32
    %14 = vector.broadcast %cst_11 : f32 to vector<16x256xf32>
    %15 = arith.maximumf %13, %14 : vector<16x256xf32>
    %16 = arith.truncf %15 : vector<16x256xf32> to vector<16x256xbf16>
    %c0_12 = arith.constant 0 : index
    %c0_13 = arith.constant 0 : index
    %17 = vector.load %arg6[%c0_12, %c0_13] : memref<256x128xbf16, #tpu.memory_space<vmem>>, vector<256x128xbf16>
    %cst_14 = arith.constant dense<0.000000e+00> : vector<16x128xf32>
    %18 = tpu.matmul %16, %17, %cst_14 {dimension_numbers = #tpu.dot_dimension_numbers<[1], [0], [0], [1], [0, 0, 1, 1], [], []>} : vector<16x256xbf16>, vector<256x128xbf16>, vector<16x128xf32> -> vector<16x128xf32>
    %c0_15 = arith.constant 0 : index
    %c0_16 = arith.constant 0 : index
    %19 = vector.load %arg7[%c0_15, %c0_16] : memref<1x128xf32, #tpu.memory_space<vmem>>, vector<1x128xf32>
    %20 = vector.broadcast %19 : vector<1x128xf32> to vector<16x128xf32>
    %21 = arith.addf %18, %20 : vector<16x128xf32>
    %cst_17 = arith.constant 0.000000e+00 : f32
    %22 = vector.broadcast %cst_17 : f32 to vector<16x128xf32>
    %23 = arith.maximumf %21, %22 : vector<16x128xf32>
    %24 = arith.truncf %23 : vector<16x128xf32> to vector<16x128xbf16>
    %c0_18 = arith.constant 0 : index
    %c0_19 = arith.constant 0 : index
    %25 = vector.load %arg8[%c0_18, %c0_19] : memref<128x128xbf16, #tpu.memory_space<vmem>>, vector<128x128xbf16>
    %cst_20 = arith.constant dense<0.000000e+00> : vector<16x128xf32>
    %26 = tpu.matmul %24, %25, %cst_20 {dimension_numbers = #tpu.dot_dimension_numbers<[1], [0], [0], [1], [0, 0, 1, 1], [], []>} : vector<16x128xbf16>, vector<128x128xbf16>, vector<16x128xf32> -> vector<16x128xf32>
    %c0_21 = arith.constant 0 : index
    %c0_22 = arith.constant 0 : index
    %27 = vector.load %arg9[%c0_21, %c0_22] : memref<1x128xf32, #tpu.memory_space<vmem>>, vector<1x128xf32>
    %28 = vector.broadcast %27 : vector<1x128xf32> to vector<16x128xf32>
    %29 = arith.addf %26, %28 : vector<16x128xf32>
    %c0_23 = arith.constant 0 : index
    %c0_24 = arith.constant 0 : index
    %30 = vector.load %arg10[%c0_23, %c0_24] : memref<16x128xf32, #tpu.memory_space<vmem>>, vector<16x128xf32>
    tpu.vector_store %arg10[%c0_23, %c0_24], %29 {strides = array<i32>} : memref<16x128xf32, #tpu.memory_space<vmem>>, vector<16x128xf32>,
    return
  }
  func.func @transform_0(%arg0: i32) -> (i32, i32) {
    %c0_i32 = arith.constant 0 : i32
    %c0_i32_0 = arith.constant 0 : i32
    return %arg0, %c0_i32 : i32, i32
  }
  func.func @transform_1(%arg0: i32) -> (i32, i32) {
    %c0_i32 = arith.constant 0 : i32
    %c0_i32_0 = arith.constant 0 : i32
    %c0_i32_1 = arith.constant 0 : i32
    return %c0_i32, %c0_i32_0 : i32, i32
  }
  func.func @transform_2(%arg0: i32) -> (i32, i32) {
    %c0_i32 = arith.constant 0 : i32
    %c0_i32_0 = arith.constant 0 : i32
    %c0_i32_1 = arith.constant 0 : i32
    return %c0_i32, %c0_i32_0 : i32, i32
  }
  func.func @transform_3(%arg0: i32) -> (i32, i32) {
    %c0_i32 = arith.constant 0 : i32
    %c0_i32_0 = arith.constant 0 : i32
    %c0_i32_1 = arith.constant 0 : i32
    return %c0_i32, %c0_i32_0 : i32, i32
  }
  func.func @transform_4(%arg0: i32) -> (i32, i32) {
    %c0_i32 = arith.constant 0 : i32
    %c0_i32_0 = arith.constant 0 : i32
    %c0_i32_1 = arith.constant 0 : i32
    return %c0_i32, %c0_i32_0 : i32, i32
  }
  func.func @transform_5(%arg0: i32) -> (i32, i32) {
    %c0_i32 = arith.constant 0 : i32
    %c0_i32_0 = arith.constant 0 : i32
    %c0_i32_1 = arith.constant 0 : i32
    return %c0_i32, %c0_i32_0 : i32, i32
  }
  func.func @transform_6(%arg0: i32) -> (i32, i32) {
    %c0_i32 = arith.constant 0 : i32
    %c0_i32_0 = arith.constant 0 : i32
    %c0_i32_1 = arith.constant 0 : i32
    return %c0_i32, %c0_i32_0 : i32, i32
  }
  func.func @transform_7(%arg0: i32) -> (i32, i32) {
    %c0_i32 = arith.constant 0 : i32
    %c0_i32_0 = arith.constant 0 : i32
    %c0_i32_1 = arith.constant 0 : i32
    return %c0_i32, %c0_i32_0 : i32, i32
  }
  func.func @transform_8(%arg0: i32) -> (i32, i32) {
    %c0_i32 = arith.constant 0 : i32
    %c0_i32_0 = arith.constant 0 : i32
    %c0_i32_1 = arith.constant 0 : i32
    return %c0_i32, %c0_i32_0 : i32, i32
  }
  func.func @transform_9(%arg0: i32) -> (i32, i32) {
    %c0_i32 = arith.constant 0 : i32
    %c0_i32_0 = arith.constant 0 : i32
    return %arg0, %c0_i32 : i32, i32
  }
}

</mosaic_0001>

<llo_original>
// kernel: neural_net_forward.1
$region0: #{neural_net_forward.1}
  #allocation0 [shape = 'u32[]', space=smem, size = 0x4, offset = 0x4, fixed_abs, tag = 'smem constant byte address 0x4 - core index']
  #allocation1 [shape = 'u32[72,128]{1,0:T(1,128)}', space=vmem, size = 0x9000, scoped, tag = 'internal scratch']
  %s0 = inlined_call_operand.vmem [shape: bf16[8,784], index: 0, kind: input, shape index: {}]
  %s1 = inlined_call_operand.vmem [shape: bf16[784,128], index: 1, kind: input, shape index: {}]
  %s2 = inlined_call_operand.vmem [shape: f32[1,128], index: 2, kind: input, shape index: {}]
  %s3 = inlined_call_operand.vmem [shape: bf16[128,256], index: 3, kind: input, shape index: {}]
  %s4 = inlined_call_operand.vmem [shape: f32[1,256], index: 4, kind: input, shape index: {}]
  %s5 = inlined_call_operand.vmem [shape: bf16[256,128], index: 5, kind: input, shape index: {}]
  %s6 = inlined_call_operand.vmem [shape: f32[1,128], index: 6, kind: input, shape index: {}]
  %s7 = inlined_call_operand.vmem [shape: bf16[128,128], index: 7, kind: input, shape index: {}]
  %s8 = inlined_call_operand.vmem [shape: f32[1,128], index: 8, kind: input, shape index: {}]
  %s9 = inlined_call_operand.hbm [shape: f32[8,128], index: 9, kind: output, shape index: {}]
  %s10 = sld [smem:[#allocation0]]
  $region46: #{neural_net_forward.1} parent=0
    _
  %s12 = ssub.s32 1, %s10
  %s13 = scalar_select 0, %s12, %s10
  $region1: #{neural_net_forward.1} parent=0
    #allocation2 [shape = 'u8[8192]{0}', space=vmem, size = 0x2000, scoped, tag = 'output window, operand 0, single buffered']
    #allocation3 [shape = 's32[1]{0}', space=sflag, size = 0x4, scoped, tag = 'scoped memory for neural_net_forward.1']
    %14 = vsyncpa [#allocation3], 0
    // Predicated region
    $region2: #{neural_net_forward.1} parent=1 // pred_check
      _
    $region3: #{neural_net_forward.1} parent=1 // pred_check_branch
      %16 = sbr.rel (0) target = $region5
    $region4: #{neural_net_forward.1} parent=1 // pred_region
      _
    $region5: #{neural_net_forward.1} parent=1 // pred_fallthru
      _
    // Predicated region
    $region6: #{neural_net_forward.1} parent=1 // pred_check
      _
    $region7: #{neural_net_forward.1} parent=1 // pred_check_branch
      %18 = sbr.rel (0) target = $region9
    $region8: #{neural_net_forward.1} parent=1 // pred_region
      _
    $region9: #{neural_net_forward.1} parent=1 // pred_fallthru
      _
    // Predicated region
    $region10: #{neural_net_forward.1} parent=1 // pred_check
      _
    $region11: #{neural_net_forward.1} parent=1 // pred_check_branch
      %20 = sbr.rel (0) target = $region13
    $region12: #{neural_net_forward.1} parent=1 // pred_region
      _
    $region13: #{neural_net_forward.1} parent=1 // pred_fallthru
      _
    // Predicated region
    $region14: #{neural_net_forward.1} parent=1 // pred_check
      _
    $region15: #{neural_net_forward.1} parent=1 // pred_check_branch
      %22 = sbr.rel (0) target = $region17
    $region16: #{neural_net_forward.1} parent=1 // pred_region
      _
    $region17: #{neural_net_forward.1} parent=1 // pred_fallthru
      _
    // Predicated region
    $region18: #{neural_net_forward.1} parent=1 // pred_check
      _
    $region19: #{neural_net_forward.1} parent=1 // pred_check_branch
      %24 = sbr.rel (0) target = $region21
    $region20: #{neural_net_forward.1} parent=1 // pred_region
      _
    $region21: #{neural_net_forward.1} parent=1 // pred_fallthru
      _
    // Predicated region
    $region22: #{neural_net_forward.1} parent=1 // pred_check
      _
    $region23: #{neural_net_forward.1} parent=1 // pred_check_branch
      %26 = sbr.rel (0) target = $region25
    $region24: #{neural_net_forward.1} parent=1 // pred_region
      _
    $region25: #{neural_net_forward.1} parent=1 // pred_fallthru
      _
    // Predicated region
    $region26: #{neural_net_forward.1} parent=1 // pred_check
      _
    $region27: #{neural_net_forward.1} parent=1 // pred_check_branch
      %28 = sbr.rel (0) target = $region29
    $region28: #{neural_net_forward.1} parent=1 // pred_region
      _
    $region29: #{neural_net_forward.1} parent=1 // pred_fallthru
      _
    // Predicated region
    $region30: #{neural_net_forward.1} parent=1 // pred_check
      _
    $region31: #{neural_net_forward.1} parent=1 // pred_check_branch
      %30 = sbr.rel (0) target = $region33
    $region32: #{neural_net_forward.1} parent=1 // pred_region
      _
    $region33: #{neural_net_forward.1} parent=1 // pred_fallthru
      _
    // Predicated region
    $region34: #{neural_net_forward.1} parent=1 // pred_check
      _
    $region35: #{neural_net_forward.1} parent=1 // pred_check_branch
      %32 = sbr.rel (0) target = $region37
    $region36: #{neural_net_forward.1} parent=1 // pred_region
      _
    $region37: #{neural_net_forward.1} parent=1 // pred_fallthru
      _
    %v34 = vld [vmem:[%s0] sm:$0xff]
    %v35 = vld [vmem:[%s0 + $0x8] sm:$0xff]
    %v36 = vld [vmem:[%s0 + $0x10] sm:$0xff]
    %v37 = vld [vmem:[%s0 + $0x18] sm:$0xf]
    %v38 = vld [vmem:[%s0 + $0x1c] sm:$0xff]
    %v39 = vld [vmem:[%s0 + $0x24] sm:$0xff]
    %v40 = vld [vmem:[%s0 + $0x2c] sm:$0xff]
    %v41 = vld [vmem:[%s0 + $0x34] sm:$0xf]
    %v42 = vld [vmem:[%s1] sm:$0xf]
    %v43 = vld [vmem:[%s1 + $0x4] sm:$0xf]
    %v44 = vld [vmem:[%s1 + $0x8] sm:$0xf]
    %v45 = vld [vmem:[%s1 + $0xc] sm:$0xf]
    %v46 = vld [vmem:[%s1 + $0x10] sm:$0xf]
    %v47 = vld [vmem:[%s1 + $0x14] sm:$0xf]
    %v48 = vld [vmem:[%s1 + $0x18] sm:$0xf]
    %v49 = vld [vmem:[%s1 + $0x1c] sm:$0xf]
    %v50 = vld [vmem:[%s1 + $0x20] sm:$0xf]
    %v51 = vld [vmem:[%s1 + $0x24] sm:$0xf]
    %v52 = vld [vmem:[%s1 + $0x28] sm:$0xf]
    %v53 = vld [vmem:[%s1 + $0x2c] sm:$0xf]
    %v54 = vld [vmem:[%s1 + $0x30] sm:$0xf]
    %v55 = vld [vmem:[%s1 + $0x34] sm:$0xf]
    %v56 = vld [vmem:[%s1 + $0x38] sm:$0xf]
    %v57 = vld [vmem:[%s1 + $0x3c] sm:$0xf]
    %v58 = vld [vmem:[%s1 + $0x40] sm:$0xf]
    %v59 = vld [vmem:[%s1 + $0x44] sm:$0xf]
    %v60 = vld [vmem:[%s1 + $0x48] sm:$0xf]
    %v61 = vld [vmem:[%s1 + $0x4c] sm:$0xf]
    %v62 = vld [vmem:[%s1 + $0x50] sm:$0xf]
    %v63 = vld [vmem:[%s1 + $0x54] sm:$0xf]
    %v64 = vld [vmem:[%s1 + $0x58] sm:$0xf]
    %v65 = vld [vmem:[%s1 + $0x5c] sm:$0xf]
    %v66 = vld [vmem:[%s1 + $0x60] sm:$0xf]
    %v67 = vld [vmem:[%s1 + $0x64] sm:$0xf]
    %v68 = vld [vmem:[%s1 + $0x68] sm:$0xf]
    %v69 = vld [vmem:[%s1 + $0x6c] sm:$0xf]
    %v70 = vld [vmem:[%s1 + $0x70] sm:$0xf]
    %v71 = vld [vmem:[%s1 + $0x74] sm:$0xf]
    %v72 = vld [vmem:[%s1 + $0x78] sm:$0xf]
    %v73 = vld [vmem:[%s1 + $0x7c] sm:$0xf]
    %v74 = vld [vmem:[%s1 + $0x80] sm:$0xf]
    %v75 = vld [vmem:[%s1 + $0x84] sm:$0xf]
    %v76 = vld [vmem:[%s1 + $0x88] sm:$0xf]
    %v77 = vld [vmem:[%s1 + $0x8c] sm:$0xf]
    %v78 = vld [vmem:[%s1 + $0x90] sm:$0xf]
    %v79 = vld [vmem:[%s1 + $0x94] sm:$0xf]
    %v80 = vld [vmem:[%s1 + $0x98] sm:$0xf]
    %v81 = vld [vmem:[%s1 + $0x9c] sm:$0xf]
    %v82 = vld [vmem:[%s1 + $0xa0] sm:$0xf]
    %v83 = vld [vmem:[%s1 + $0xa4] sm:$0xf]
    %v84 = vld [vmem:[%s1 + $0xa8] sm:$0xf]
    %v85 = vld [vmem:[%s1 + $0xac] sm:$0xf]
    %v86 = vld [vmem:[%s1 + $0xb0] sm:$0xf]
    %v87 = vld [vmem:[%s1 + $0xb4] sm:$0xf]
    %v88 = vld [vmem:[%s1 + $0xb8] sm:$0xf]
    %v89 = vld [vmem:[%s1 + $0xbc] sm:$0xf]
    %v90 = vld [vmem:[%s1 + $0xc0] sm:$0xf]
    %v91 = vld [vmem:[%s1 + $0xc4] sm:$0xf]
    %v92 = vld [vmem:[%s1 + $0xc8] sm:$0xf]
    %v93 = vld [vmem:[%s1 + $0xcc] sm:$0xf]
    %v94 = vld [vmem:[%s1 + $0xd0] sm:$0xf]
    %v95 = vld [vmem:[%s1 + $0xd4] sm:$0xf]
    %v96 = vld [vmem:[%s1 + $0xd8] sm:$0xf]
    %v97 = vld [vmem:[%s1 + $0xdc] sm:$0xf]
    %v98 = vld [vmem:[%s1 + $0xe0] sm:$0xf]
    %v99 = vld [vmem:[%s1 + $0xe4] sm:$0xf]
    %v100 = vld [vmem:[%s1 + $0xe8] sm:$0xf]
    %v101 = vld [vmem:[%s1 + $0xec] sm:$0xf]
    %v102 = vld [vmem:[%s1 + $0xf0] sm:$0xf]
    %v103 = vld [vmem:[%s1 + $0xf4] sm:$0xf]
    %v104 = vld [vmem:[%s1 + $0xf8] sm:$0xf]
    %v105 = vld [vmem:[%s1 + $0xfc] sm:$0xf]
    %v106 = vld [vmem:[%s1 + $0x100] sm:$0xf]
    %v107 = vld [vmem:[%s1 + $0x104] sm:$0xf]
    %v108 = vld [vmem:[%s1 + $0x108] sm:$0xf]
    %v109 = vld [vmem:[%s1 + $0x10c] sm:$0xf]
    %v110 = vld [vmem:[%s1 + $0x110] sm:$0xf]
    %v111 = vld [vmem:[%s1 + $0x114] sm:$0xf]
    %v112 = vld [vmem:[%s1 + $0x118] sm:$0xf]
    %v113 = vld [vmem:[%s1 + $0x11c] sm:$0xf]
    %v114 = vld [vmem:[%s1 + $0x120] sm:$0xf]
    %v115 = vld [vmem:[%s1 + $0x124] sm:$0xf]
    %v116 = vld [vmem:[%s1 + $0x128] sm:$0xf]
    %v117 = vld [vmem:[%s1 + $0x12c] sm:$0xf]
    %v118 = vld [vmem:[%s1 + $0x130] sm:$0xf]
    %v119 = vld [vmem:[%s1 + $0x134] sm:$0xf]
    %v120 = vld [vmem:[%s1 + $0x138] sm:$0xf]
    %v121 = vld [vmem:[%s1 + $0x13c] sm:$0xf]
    %v122 = vld [vmem:[%s1 + $0x140] sm:$0xf]
    %v123 = vld [vmem:[%s1 + $0x144] sm:$0xf]
    %v124 = vld [vmem:[%s1 + $0x148] sm:$0xf]
    %v125 = vld [vmem:[%s1 + $0x14c] sm:$0xf]
    %v126 = vld [vmem:[%s1 + $0x150] sm:$0xf]
    %v127 = vld [vmem:[%s1 + $0x154] sm:$0xf]
    %v128 = vld [vmem:[%s1 + $0x158] sm:$0xf]
    %v129 = vld [vmem:[%s1 + $0x15c] sm:$0xf]
    %v130 = vld [vmem:[%s1 + $0x160] sm:$0xf]
    %v131 = vld [vmem:[%s1 + $0x164] sm:$0xf]
    %v132 = vld [vmem:[%s1 + $0x168] sm:$0xf]
    %v133 = vld [vmem:[%s1 + $0x16c] sm:$0xf]
    %v134 = vld [vmem:[%s1 + $0x170] sm:$0xf]
    %v135 = vld [vmem:[%s1 + $0x174] sm:$0xf]
    %v136 = vld [vmem:[%s1 + $0x178] sm:$0xf]
    %v137 = vld [vmem:[%s1 + $0x17c] sm:$0xf]
    %v138 = vld [vmem:[%s1 + $0x180] sm:$0xf]
    %v139 = vld [vmem:[%s1 + $0x184] sm:$0xf]
    %v140 = vld [vmem:[%s2] sm:$0x1]
    %v142 = vperm.slane %v140, 0
    %v152 = vunpack.c.l.b16 %v34
    %v153 = vunpack.c.h.b16 %v34
    %v154 = vunpack.c.l.b16 %v35
    %v155 = vunpack.c.h.b16 %v35
    %v156 = vunpack.c.l.b16 %v36
    %v157 = vunpack.c.h.b16 %v36
    %v158 = vunpack.c.l.b16 %v37
    %v159 = vunpack.c.l.b16 %v38
    %v160 = vunpack.c.h.b16 %v38
    %v161 = vunpack.c.l.b16 %v39
    %v162 = vunpack.c.h.b16 %v39
    %v163 = vunpack.c.l.b16 %v40
    %v164 = vunpack.c.h.b16 %v40
    %v165 = vunpack.c.l.b16 %v41
    %v166 = vpack.c.b16 %v159, %v152
    %v167 = vpack.c.b16 %v160, %v153
    %v168 = vpack.c.b16 %v161, %v154
    %v169 = vpack.c.b16 %v162, %v155
    %v170 = vpack.c.b16 %v163, %v156
    %v171 = vpack.c.b16 %v164, %v157
    %v172 = vpack.c.b16 %v165, %v158
    %v277 = vunpack.c.l.b16 %v42
    %v278 = vunpack.c.l.b16 %v43
    %v279 = vunpack.c.l.b16 %v44
    %v280 = vunpack.c.l.b16 %v45
    %v281 = vunpack.c.l.b16 %v46
    %v282 = vunpack.c.l.b16 %v47
    %v283 = vunpack.c.l.b16 %v48
    %v284 = vunpack.c.l.b16 %v49
    %v285 = vunpack.c.l.b16 %v50
    %v286 = vunpack.c.l.b16 %v51
    %v287 = vunpack.c.l.b16 %v52
    %v288 = vunpack.c.l.b16 %v53
    %v289 = vunpack.c.l.b16 %v54
    %v290 = vunpack.c.l.b16 %v55
    %v291 = vunpack.c.l.b16 %v56
    %v292 = vunpack.c.l.b16 %v57
    %v293 = vunpack.c.l.b16 %v58
    %v294 = vunpack.c.l.b16 %v59
    %v295 = vunpack.c.l.b16 %v60
    %v296 = vunpack.c.l.b16 %v61
    %v297 = vunpack.c.l.b16 %v62
    %v298 = vunpack.c.l.b16 %v63
    %v299 = vunpack.c.l.b16 %v64
    %v300 = vunpack.c.l.b16 %v65
    %v301 = vunpack.c.l.b16 %v66
    %v302 = vunpack.c.l.b16 %v67
    %v303 = vunpack.c.l.b16 %v68
    %v304 = vunpack.c.l.b16 %v69
    %v305 = vunpack.c.l.b16 %v70
    %v306 = vunpack.c.l.b16 %v71
    %v307 = vunpack.c.l.b16 %v72
    %v308 = vunpack.c.l.b16 %v73
    %v309 = vunpack.c.l.b16 %v74
    %v310 = vunpack.c.l.b16 %v75
    %v311 = vunpack.c.l.b16 %v76
    %v312 = vunpack.c.l.b16 %v77
    %v313 = vunpack.c.l.b16 %v78
    %v314 = vunpack.c.l.b16 %v79
    %v315 = vunpack.c.l.b16 %v80
    %v316 = vunpack.c.l.b16 %v81
    %v317 = vunpack.c.l.b16 %v82
    %v318 = vunpack.c.l.b16 %v83
    %v319 = vunpack.c.l.b16 %v84
    %v320 = vunpack.c.l.b16 %v85
    %v321 = vunpack.c.l.b16 %v86
    %v322 = vunpack.c.l.b16 %v87
    %v323 = vunpack.c.l.b16 %v88
    %v324 = vunpack.c.l.b16 %v89
    %v325 = vunpack.c.l.b16 %v90
    %v326 = vunpack.c.l.b16 %v91
    %v327 = vunpack.c.l.b16 %v92
    %v328 = vunpack.c.l.b16 %v93
    %v329 = vunpack.c.l.b16 %v94
    %v330 = vunpack.c.l.b16 %v95
    %v331 = vunpack.c.l.b16 %v96
    %v332 = vunpack.c.l.b16 %v97
    %v333 = vunpack.c.l.b16 %v98
    %v334 = vunpack.c.l.b16 %v99
    %v335 = vunpack.c.l.b16 %v100
    %v336 = vunpack.c.l.b16 %v101
    %v337 = vunpack.c.l.b16 %v102
    %v338 = vunpack.c.l.b16 %v103
    %v339 = vunpack.c.l.b16 %v104
    %v340 = vunpack.c.l.b16 %v105
    %v341 = vunpack.c.l.b16 %v106
    %v342 = vunpack.c.l.b16 %v107
    %v343 = vunpack.c.l.b16 %v108
    %v344 = vunpack.c.l.b16 %v109
    %v345 = vunpack.c.l.b16 %v110
    %v346 = vunpack.c.l.b16 %v111
    %v347 = vunpack.c.l.b16 %v112
    %v348 = vunpack.c.l.b16 %v113
    %v349 = vunpack.c.l.b16 %v114
    %v350 = vunpack.c.l.b16 %v115
    %v351 = vunpack.c.l.b16 %v116
    %v352 = vunpack.c.l.b16 %v117
    %v353 = vunpack.c.l.b16 %v118
    %v354 = vunpack.c.l.b16 %v119
    %v355 = vunpack.c.l.b16 %v120
    %v356 = vunpack.c.l.b16 %v121
    %v357 = vunpack.c.l.b16 %v122
    %v358 = vunpack.c.l.b16 %v123
    %v359 = vunpack.c.l.b16 %v124
    %v360 = vunpack.c.l.b16 %v125
    %v361 = vunpack.c.l.b16 %v126
    %v362 = vunpack.c.l.b16 %v127
    %v363 = vunpack.c.l.b16 %v128
    %v364 = vunpack.c.l.b16 %v129
    %v365 = vunpack.c.l.b16 %v130
    %v366 = vunpack.c.l.b16 %v131
    %v367 = vunpack.c.l.b16 %v132
    %v368 = vunpack.c.l.b16 %v133
    %v369 = vunpack.c.l.b16 %v134
    %v370 = vunpack.c.l.b16 %v135
    %v371 = vunpack.c.l.b16 %v136
    %v372 = vunpack.c.l.b16 %v137
    %v373 = vunpack.c.l.b16 %v138
    %v374 = vunpack.c.l.b16 %v139
    %v375 = vpack.c.b16 %v278, %v277
    %v376 = vpack.c.b16 %v280, %v279
    %v377 = vpack.c.b16 %v282, %v281
    %v378 = vpack.c.b16 %v284, %v283
    %v379 = vpack.c.b16 %v286, %v285
    %v380 = vpack.c.b16 %v288, %v287
    %v381 = vpack.c.b16 %v290, %v289
    %v382 = vpack.c.b16 %v292, %v291
    %v383 = vpack.c.b16 %v294, %v293
    %v384 = vpack.c.b16 %v296, %v295
    %v385 = vpack.c.b16 %v298, %v297
    %v386 = vpack.c.b16 %v300, %v299
    %v387 = vpack.c.b16 %v302, %v301
    %v388 = vpack.c.b16 %v304, %v303
    %v389 = vpack.c.b16 %v306, %v305
    %v390 = vpack.c.b16 %v308, %v307
    %v391 = vpack.c.b16 %v310, %v309
    %v392 = vpack.c.b16 %v312, %v311
    %v393 = vpack.c.b16 %v314, %v313
    %v394 = vpack.c.b16 %v316, %v315
    %v395 = vpack.c.b16 %v318, %v317
    %v396 = vpack.c.b16 %v320, %v319
    %v397 = vpack.c.b16 %v322, %v321
    %v398 = vpack.c.b16 %v324, %v323
    %v399 = vpack.c.b16 %v326, %v325
    %v400 = vpack.c.b16 %v328, %v327
    %v401 = vpack.c.b16 %v330, %v329
    %v402 = vpack.c.b16 %v332, %v331
    %v403 = vpack.c.b16 %v334, %v333
    %v404 = vpack.c.b16 %v336, %v335
    %v405 = vpack.c.b16 %v338, %v337
    %v406 = vpack.c.b16 %v340, %v339
    %v407 = vpack.c.b16 %v342, %v341
    %v408 = vpack.c.b16 %v344, %v343
    %v409 = vpack.c.b16 %v346, %v345
    %v410 = vpack.c.b16 %v348, %v347
    %v411 = vpack.c.b16 %v350, %v349
    %v412 = vpack.c.b16 %v352, %v351
    %v413 = vpack.c.b16 %v354, %v353
    %v414 = vpack.c.b16 %v356, %v355
    %v415 = vpack.c.b16 %v358, %v357
    %v416 = vpack.c.b16 %v360, %v359
    %v417 = vpack.c.b16 %v362, %v361
    %v418 = vpack.c.b16 %v364, %v363
    %v419 = vpack.c.b16 %v366, %v365
    %v420 = vpack.c.b16 %v368, %v367
    %v421 = vpack.c.b16 %v370, %v369
    %v422 = vpack.c.b16 %v372, %v371
    %v423 = vpack.c.b16 %v374, %v373
    %vm473 = vcmask 130048
    %v475 = vsel %vm473, %v172, 0
    %477 = vmatpush.bf16.msra.mxu0 %v382
    %478 = vmatpush.bf16.msra.mxu0 %v381
    %479 = vmatpush.bf16.msra.mxu0 %v380
    %480 = vmatpush.bf16.msra.mxu0 %v379
    %481 = vmatpush.bf16.msra.mxu0 %v378
    %482 = vmatpush.bf16.msra.mxu0 %v377
    %483 = vmatpush.bf16.msra.mxu0 %v376
    %484 = vmatpush.bf16.msra.mxu0 %v375
    %485 = vmatmul.bf16.gmra.mxu0 %v166
    %v486 = vpop.f32.mrf.mxu0
    %v487 = vadd.f32 %v142, %v486
    %v488 = vpop.f32.mrf.mxu0
    %v489 = vadd.f32 %v142, %v488
    %490 = vdwg.mxu0
    %491 = vmatpush.bf16.msra.mxu0 %v390
    %492 = vmatpush.bf16.msra.mxu0 %v389
    %493 = vmatpush.bf16.msra.mxu0 %v388
    %494 = vmatpush.bf16.msra.mxu0 %v387
    %495 = vmatpush.bf16.msra.mxu0 %v386
    %496 = vmatpush.bf16.msra.mxu0 %v385
    %497 = vmatpush.bf16.msra.mxu0 %v384
    %498 = vmatpush.bf16.msra.mxu0 %v383
    %499 = vmatmul.bf16.gmra.mxu0 %v167
    %v500 = vpop.f32.mrf.mxu0
    %v501 = vadd.f32 %v487, %v500
    %v502 = vpop.f32.mrf.mxu0
    %v503 = vadd.f32 %v489, %v502
    %504 = vdwg.mxu0
    %505 = vmatpush.bf16.msra.mxu0 %v398
    %506 = vmatpush.bf16.msra.mxu0 %v397
    %507 = vmatpush.bf16.msra.mxu0 %v396
    %508 = vmatpush.bf16.msra.mxu0 %v395
    %509 = vmatpush.bf16.msra.mxu0 %v394
    %510 = vmatpush.bf16.msra.mxu0 %v393
    %511 = vmatpush.bf16.msra.mxu0 %v392
    %512 = vmatpush.bf16.msra.mxu0 %v391
    %513 = vmatmul.bf16.gmra.mxu0 %v168
    %v514 = vpop.f32.mrf.mxu0
    %v515 = vadd.f32 %v501, %v514
    %v516 = vpop.f32.mrf.mxu0
    %v517 = vadd.f32 %v503, %v516
    %518 = vdwg.mxu0
    %519 = vmatpush.bf16.msra.mxu0 %v406
    %520 = vmatpush.bf16.msra.mxu0 %v405
    %521 = vmatpush.bf16.msra.mxu0 %v404
    %522 = vmatpush.bf16.msra.mxu0 %v403
    %523 = vmatpush.bf16.msra.mxu0 %v402
    %524 = vmatpush.bf16.msra.mxu0 %v401
    %525 = vmatpush.bf16.msra.mxu0 %v400
    %526 = vmatpush.bf16.msra.mxu0 %v399
    %527 = vmatmul.bf16.gmra.mxu0 %v169
    %v528 = vpop.f32.mrf.mxu0
    %v529 = vadd.f32 %v515, %v528
    %v530 = vpop.f32.mrf.mxu0
    %v531 = vadd.f32 %v517, %v530
    %532 = vdwg.mxu0
    %533 = vmatpush.bf16.msra.mxu0 %v414
    %534 = vmatpush.bf16.msra.mxu0 %v413
    %535 = vmatpush.bf16.msra.mxu0 %v412
    %536 = vmatpush.bf16.msra.mxu0 %v411
    %537 = vmatpush.bf16.msra.mxu0 %v410
    %538 = vmatpush.bf16.msra.mxu0 %v409
    %539 = vmatpush.bf16.msra.mxu0 %v408
    %540 = vmatpush.bf16.msra.mxu0 %v407
    %541 = vmatmul.bf16.gmra.mxu0 %v170
    %v542 = vpop.f32.mrf.mxu0
    %v543 = vadd.f32 %v529, %v542
    %v544 = vpop.f32.mrf.mxu0
    %v545 = vadd.f32 %v531, %v544
    %546 = vdwg.mxu0
    %547 = vmatpush.bf16.msra.mxu0 %v422
    %548 = vmatpush.bf16.msra.mxu0 %v421
    %549 = vmatpush.bf16.msra.mxu0 %v420
    %550 = vmatpush.bf16.msra.mxu0 %v419
    %551 = vmatpush.bf16.msra.mxu0 %v418
    %552 = vmatpush.bf16.msra.mxu0 %v417
    %553 = vmatpush.bf16.msra.mxu0 %v416
    %554 = vmatpush.bf16.msra.mxu0 %v415
    %555 = vmatmul.bf16.gmra.mxu0 %v171
    %v556 = vpop.f32.mrf.mxu0
    %v557 = vadd.f32 %v543, %v556
    %v558 = vpop.f32.mrf.mxu0
    %v559 = vadd.f32 %v545, %v558
    %560 = vdwg.mxu0
    %561 = vmatpush.bf16.msra.mxu0 0
    %562 = vmatpush.bf16.msra.mxu0 0
    %563 = vmatpush.bf16.msra.mxu0 0
    %564 = vmatpush.bf16.msra.mxu0 0
    %565 = vmatpush.bf16.msra.mxu0 0
    %566 = vmatpush.bf16.msra.mxu0 0
    %567 = vmatpush.bf16.msra.mxu0 0
    %568 = vmatpush.bf16.msra.mxu0 %v423
    %569 = vmatmul.bf16.gmra.mxu0 %v475
    %v570 = vpop.f32.mrf.mxu0
    %v571 = vadd.f32 %v557, %v570
    %v572 = vpop.f32.mrf.mxu0
    %v573 = vadd.f32 %v559, %v572
    %574 = vdwg.mxu0
    %v575 = vmax.f32 %v571, 0.0
    %v576 = vmax.f32 %v573, 0.0
    %v577 = vpack.c.bf16 %v576, %v575
    %v578 = vld [vmem:[%s3] sm:$0xff]
    %v579 = vld [vmem:[%s3 + $0x8] sm:$0xff]
    %v580 = vld [vmem:[%s3 + $0x10] sm:$0xff]
    %v581 = vld [vmem:[%s3 + $0x18] sm:$0xff]
    %v582 = vld [vmem:[%s3 + $0x20] sm:$0xff]
    %v583 = vld [vmem:[%s3 + $0x28] sm:$0xff]
    %v584 = vld [vmem:[%s3 + $0x30] sm:$0xff]
    %v585 = vld [vmem:[%s3 + $0x38] sm:$0xff]
    %v586 = vld [vmem:[%s3 + $0x40] sm:$0xff]
    %v587 = vld [vmem:[%s3 + $0x48] sm:$0xff]
    %v588 = vld [vmem:[%s3 + $0x50] sm:$0xff]
    %v589 = vld [vmem:[%s3 + $0x58] sm:$0xff]
    %v590 = vld [vmem:[%s3 + $0x60] sm:$0xff]
    %v591 = vld [vmem:[%s3 + $0x68] sm:$0xff]
    %v592 = vld [vmem:[%s3 + $0x70] sm:$0xff]
    %v593 = vld [vmem:[%s3 + $0x78] sm:$0xff]
    %v594 = vld [vmem:[%s4] sm:$0x3]
    %v596 = vperm.slane %v594, 0
    %v597 = vperm.slane %v594, 1
    %v616 = vunpack.c.l.b16 %v578
    %v617 = vunpack.c.h.b16 %v578
    %v618 = vunpack.c.l.b16 %v579
    %v619 = vunpack.c.h.b16 %v579
    %v620 = vunpack.c.l.b16 %v580
    %v621 = vunpack.c.h.b16 %v580
    %v622 = vunpack.c.l.b16 %v581
    %v623 = vunpack.c.h.b16 %v581
    %v624 = vunpack.c.l.b16 %v582
    %v625 = vunpack.c.h.b16 %v582
    %v626 = vunpack.c.l.b16 %v583
    %v627 = vunpack.c.h.b16 %v583
    %v628 = vunpack.c.l.b16 %v584
    %v629 = vunpack.c.h.b16 %v584
    %v630 = vunpack.c.l.b16 %v585
    %v631 = vunpack.c.h.b16 %v585
    %v632 = vunpack.c.l.b16 %v586
    %v633 = vunpack.c.h.b16 %v586
    %v634 = vunpack.c.l.b16 %v587
    %v635 = vunpack.c.h.b16 %v587
    %v636 = vunpack.c.l.b16 %v588
    %v637 = vunpack.c.h.b16 %v588
    %v638 = vunpack.c.l.b16 %v589
    %v639 = vunpack.c.h.b16 %v589
    %v640 = vunpack.c.l.b16 %v590
    %v641 = vunpack.c.h.b16 %v590
    %v642 = vunpack.c.l.b16 %v591
    %v643 = vunpack.c.h.b16 %v591
    %v644 = vunpack.c.l.b16 %v592
    %v645 = vunpack.c.h.b16 %v592
    %v646 = vunpack.c.l.b16 %v593
    %v647 = vunpack.c.h.b16 %v593
    %v648 = vpack.c.b16 %v618, %v616
    %v649 = vpack.c.b16 %v619, %v617
    %v650 = vpack.c.b16 %v622, %v620
    %v651 = vpack.c.b16 %v623, %v621
    %v652 = vpack.c.b16 %v626, %v624
    %v653 = vpack.c.b16 %v627, %v625
    %v654 = vpack.c.b16 %v630, %v628
    %v655 = vpack.c.b16 %v631, %v629
    %v656 = vpack.c.b16 %v634, %v632
    %v657 = vpack.c.b16 %v635, %v633
    %v658 = vpack.c.b16 %v638, %v636
    %v659 = vpack.c.b16 %v639, %v637
    %v660 = vpack.c.b16 %v642, %v640
    %v661 = vpack.c.b16 %v643, %v641
    %v662 = vpack.c.b16 %v646, %v644
    %v663 = vpack.c.b16 %v647, %v645
    %680 = vmatpush.bf16.msra.mxu0 %v662
    %681 = vmatpush.bf16.msra.mxu0 %v660
    %682 = vmatpush.bf16.msra.mxu0 %v658
    %683 = vmatpush.bf16.msra.mxu0 %v656
    %684 = vmatpush.bf16.msra.mxu0 %v654
    %685 = vmatpush.bf16.msra.mxu0 %v652
    %686 = vmatpush.bf16.msra.mxu0 %v650
    %687 = vmatpush.bf16.msra.mxu0 %v648
    %688 = vmatmul.bf16.gmra.mxu0 %v577
    %v689 = vpop.f32.mrf.mxu0
    %v690 = vadd.f32 %v596, %v689
    %v691 = vpop.f32.mrf.mxu0
    %v692 = vadd.f32 %v596, %v691
    %693 = vdwg.mxu0
    %694 = vmatpush.bf16.msra.mxu0 %v663
    %695 = vmatpush.bf16.msra.mxu0 %v661
    %696 = vmatpush.bf16.msra.mxu0 %v659
    %697 = vmatpush.bf16.msra.mxu0 %v657
    %698 = vmatpush.bf16.msra.mxu0 %v655
    %699 = vmatpush.bf16.msra.mxu0 %v653
    %700 = vmatpush.bf16.msra.mxu0 %v651
    %701 = vmatpush.bf16.msra.mxu0 %v649
    %702 = vmatmul.bf16.gmra.mxu0 %v577
    %v703 = vpop.f32.mrf.mxu0
    %v704 = vadd.f32 %v597, %v703
    %v705 = vpop.f32.mrf.mxu0
    %v706 = vadd.f32 %v597, %v705
    %707 = vdwg.mxu0
    %v708 = vmax.f32 %v690, 0.0
    %v709 = vmax.f32 %v704, 0.0
    %v710 = vmax.f32 %v692, 0.0
    %v711 = vmax.f32 %v706, 0.0
    %v712 = vpack.c.bf16 %v710, %v708
    %v713 = vpack.c.bf16 %v711, %v709
    %v714 = vld [vmem:[%s5] sm:$0xf]
    %v715 = vld [vmem:[%s5 + $0x4] sm:$0xf]
    %v716 = vld [vmem:[%s5 + $0x8] sm:$0xf]
    %v717 = vld [vmem:[%s5 + $0xc] sm:$0xf]
    %v718 = vld [vmem:[%s5 + $0x10] sm:$0xf]
    %v719 = vld [vmem:[%s5 + $0x14] sm:$0xf]
    %v720 = vld [vmem:[%s5 + $0x18] sm:$0xf]
    %v721 = vld [vmem:[%s5 + $0x1c] sm:$0xf]
    %v722 = vld [vmem:[%s5 + $0x20] sm:$0xf]
    %v723 = vld [vmem:[%s5 + $0x24] sm:$0xf]
    %v724 = vld [vmem:[%s5 + $0x28] sm:$0xf]
    %v725 = vld [vmem:[%s5 + $0x2c] sm:$0xf]
    %v726 = vld [vmem:[%s5 + $0x30] sm:$0xf]
    %v727 = vld [vmem:[%s5 + $0x34] sm:$0xf]
    %v728 = vld [vmem:[%s5 + $0x38] sm:$0xf]
    %v729 = vld [vmem:[%s5 + $0x3c] sm:$0xf]
    %v730 = vld [vmem:[%s5 + $0x40] sm:$0xf]
    %v731 = vld [vmem:[%s5 + $0x44] sm:$0xf]
    %v732 = vld [vmem:[%s5 + $0x48] sm:$0xf]
    %v733 = vld [vmem:[%s5 + $0x4c] sm:$0xf]
    %v734 = vld [vmem:[%s5 + $0x50] sm:$0xf]
    %v735 = vld [vmem:[%s5 + $0x54] sm:$0xf]
    %v736 = vld [vmem:[%s5 + $0x58] sm:$0xf]
    %v737 = vld [vmem:[%s5 + $0x5c] sm:$0xf]
    %v738 = vld [vmem:[%s5 + $0x60] sm:$0xf]
    %v739 = vld [vmem:[%s5 + $0x64] sm:$0xf]
    %v740 = vld [vmem:[%s5 + $0x68] sm:$0xf]
    %v741 = vld [vmem:[%s5 + $0x6c] sm:$0xf]
    %v742 = vld [vmem:[%s5 + $0x70] sm:$0xf]
    %v743 = vld [vmem:[%s5 + $0x74] sm:$0xf]
    %v744 = vld [vmem:[%s5 + $0x78] sm:$0xf]
    %v745 = vld [vmem:[%s5 + $0x7c] sm:$0xf]
    %v746 = vld [vmem:[%s6] sm:$0x1]
    %v748 = vperm.slane %v746, 0
    %v782 = vunpack.c.l.b16 %v714
    %v783 = vunpack.c.l.b16 %v715
    %v784 = vunpack.c.l.b16 %v716
    %v785 = vunpack.c.l.b16 %v717
    %v786 = vunpack.c.l.b16 %v718
    %v787 = vunpack.c.l.b16 %v719
    %v788 = vunpack.c.l.b16 %v720
    %v789 = vunpack.c.l.b16 %v721
    %v790 = vunpack.c.l.b16 %v722
    %v791 = vunpack.c.l.b16 %v723
    %v792 = vunpack.c.l.b16 %v724
    %v793 = vunpack.c.l.b16 %v725
    %v794 = vunpack.c.l.b16 %v726
    %v795 = vunpack.c.l.b16 %v727
    %v796 = vunpack.c.l.b16 %v728
    %v797 = vunpack.c.l.b16 %v729
    %v798 = vunpack.c.l.b16 %v730
    %v799 = vunpack.c.l.b16 %v731
    %v800 = vunpack.c.l.b16 %v732
    %v801 = vunpack.c.l.b16 %v733
    %v802 = vunpack.c.l.b16 %v734
    %v803 = vunpack.c.l.b16 %v735
    %v804 = vunpack.c.l.b16 %v736
    %v805 = vunpack.c.l.b16 %v737
    %v806 = vunpack.c.l.b16 %v738
    %v807 = vunpack.c.l.b16 %v739
    %v808 = vunpack.c.l.b16 %v740
    %v809 = vunpack.c.l.b16 %v741
    %v810 = vunpack.c.l.b16 %v742
    %v811 = vunpack.c.l.b16 %v743
    %v812 = vunpack.c.l.b16 %v744
    %v813 = vunpack.c.l.b16 %v745
    %v814 = vpack.c.b16 %v783, %v782
    %v815 = vpack.c.b16 %v785, %v784
    %v816 = vpack.c.b16 %v787, %v786
    %v817 = vpack.c.b16 %v789, %v788
    %v818 = vpack.c.b16 %v791, %v790
    %v819 = vpack.c.b16 %v793, %v792
    %v820 = vpack.c.b16 %v795, %v794
    %v821 = vpack.c.b16 %v797, %v796
    %v822 = vpack.c.b16 %v799, %v798
    %v823 = vpack.c.b16 %v801, %v800
    %v824 = vpack.c.b16 %v803, %v802
    %v825 = vpack.c.b16 %v805, %v804
    %v826 = vpack.c.b16 %v807, %v806
    %v827 = vpack.c.b16 %v809, %v808
    %v828 = vpack.c.b16 %v811, %v810
    %v829 = vpack.c.b16 %v813, %v812
    %846 = vmatpush.bf16.msra.mxu0 %v821
    %847 = vmatpush.bf16.msra.mxu0 %v820
    %848 = vmatpush.bf16.msra.mxu0 %v819
    %849 = vmatpush.bf16.msra.mxu0 %v818
    %850 = vmatpush.bf16.msra.mxu0 %v817
    %851 = vmatpush.bf16.msra.mxu0 %v816
    %852 = vmatpush.bf16.msra.mxu0 %v815
    %853 = vmatpush.bf16.msra.mxu0 %v814
    %854 = vmatmul.bf16.gmra.mxu0 %v712
    %v855 = vpop.f32.mrf.mxu0
    %v856 = vadd.f32 %v748, %v855
    %v857 = vpop.f32.mrf.mxu0
    %v858 = vadd.f32 %v748, %v857
    %859 = vdwg.mxu0
    %860 = vmatpush.bf16.msra.mxu0 %v829
    %861 = vmatpush.bf16.msra.mxu0 %v828
    %862 = vmatpush.bf16.msra.mxu0 %v827
    %863 = vmatpush.bf16.msra.mxu0 %v826
    %864 = vmatpush.bf16.msra.mxu0 %v825
    %865 = vmatpush.bf16.msra.mxu0 %v824
    %866 = vmatpush.bf16.msra.mxu0 %v823
    %867 = vmatpush.bf16.msra.mxu0 %v822
    %868 = vmatmul.bf16.gmra.mxu0 %v713
    %v869 = vpop.f32.mrf.mxu0
    %v870 = vadd.f32 %v856, %v869
    %v871 = vpop.f32.mrf.mxu0
    %v872 = vadd.f32 %v858, %v871
    %873 = vdwg.mxu0
    %v874 = vmax.f32 %v870, 0.0
    %v875 = vmax.f32 %v872, 0.0
    %v876 = vpack.c.bf16 %v875, %v874
    %v877 = vld [vmem:[%s7] sm:$0xf]
    %v878 = vld [vmem:[%s7 + $0x4] sm:$0xf]
    %v879 = vld [vmem:[%s7 + $0x8] sm:$0xf]
    %v880 = vld [vmem:[%s7 + $0xc] sm:$0xf]
    %v881 = vld [vmem:[%s7 + $0x10] sm:$0xf]
    %v882 = vld [vmem:[%s7 + $0x14] sm:$0xf]
    %v883 = vld [vmem:[%s7 + $0x18] sm:$0xf]
    %v884 = vld [vmem:[%s7 + $0x1c] sm:$0xf]
    %v885 = vld [vmem:[%s7 + $0x20] sm:$0xf]
    %v886 = vld [vmem:[%s7 + $0x24] sm:$0xf]
    %v887 = vld [vmem:[%s7 + $0x28] sm:$0xf]
    %v888 = vld [vmem:[%s7 + $0x2c] sm:$0xf]
    %v889 = vld [vmem:[%s7 + $0x30] sm:$0xf]
    %v890 = vld [vmem:[%s7 + $0x34] sm:$0xf]
    %v891 = vld [vmem:[%s7 + $0x38] sm:$0xf]
    %v892 = vld [vmem:[%s7 + $0x3c] sm:$0xf]
    %v893 = vld [vmem:[%s8] sm:$0x1]
    %v895 = vperm.slane %v893, 0
    %v913 = vunpack.c.l.b16 %v877
    %v914 = vunpack.c.l.b16 %v878
    %v915 = vunpack.c.l.b16 %v879
    %v916 = vunpack.c.l.b16 %v880
    %v917 = vunpack.c.l.b16 %v881
    %v918 = vunpack.c.l.b16 %v882
    %v919 = vunpack.c.l.b16 %v883
    %v920 = vunpack.c.l.b16 %v884
    %v921 = vunpack.c.l.b16 %v885
    %v922 = vunpack.c.l.b16 %v886
    %v923 = vunpack.c.l.b16 %v887
    %v924 = vunpack.c.l.b16 %v888
    %v925 = vunpack.c.l.b16 %v889
    %v926 = vunpack.c.l.b16 %v890
    %v927 = vunpack.c.l.b16 %v891
    %v928 = vunpack.c.l.b16 %v892
    %v929 = vpack.c.b16 %v914, %v913
    %v930 = vpack.c.b16 %v916, %v915
    %v931 = vpack.c.b16 %v918, %v917
    %v932 = vpack.c.b16 %v920, %v919
    %v933 = vpack.c.b16 %v922, %v921
    %v934 = vpack.c.b16 %v924, %v923
    %v935 = vpack.c.b16 %v926, %v925
    %v936 = vpack.c.b16 %v928, %v927
    %945 = vmatpush.bf16.msra.mxu0 %v936
    %946 = vmatpush.bf16.msra.mxu0 %v935
    %947 = vmatpush.bf16.msra.mxu0 %v934
    %948 = vmatpush.bf16.msra.mxu0 %v933
    %949 = vmatpush.bf16.msra.mxu0 %v932
    %950 = vmatpush.bf16.msra.mxu0 %v931
    %951 = vmatpush.bf16.msra.mxu0 %v930
    %952 = vmatpush.bf16.msra.mxu0 %v929
    %953 = vmatmul.bf16.gmra.mxu0 %v876
    %v954 = vpop.f32.mrf.mxu0
    %v955 = vadd.f32 %v895, %v954
    %v956 = vpop.f32.mrf.mxu0
    %v957 = vadd.f32 %v895, %v956
    %958 = vdwg.mxu0
    %959 = vst [vmem:[#allocation2] sm:$0xff] %v955
    %960 = vst [vmem:[#allocation2 + $0x8] sm:$0xff] %v957
    // Predicated region
    $region38: #{neural_net_forward.1} parent=1 // pred_check
      _
    $region39: #{neural_net_forward.1} parent=1 // pred_check_branch
      %962 = sbr.rel (0) target = $region41
    $region40: #{neural_net_forward.1} parent=1 // pred_region
      %964 = vsyncadd [#allocation3], 128
      %s965 = sshll.u32 [#allocation2], 4
      %s966 = int_to_ptr.vmem [resolvable:$true] %s965
      %s967 = sshll.u32 %s9, 4
      %s968 = int_to_ptr.hbm [resolvable:$true] %s967
      %973 = dma.vmem_to_hbm [thread:$0]  %s966, 128, %s968, [#allocation3], 128, 128, 8
    $region41: #{neural_net_forward.1} parent=1 // pred_fallthru
      _
    // Predicated region
    $region42: #{neural_net_forward.1} parent=1 // pred_check
      _
    $region43: #{neural_net_forward.1} parent=1 // pred_check_branch
      %975 = sbr.rel (0) target = $region45
    $region44: #{neural_net_forward.1} parent=1 // pred_region
      %977 = dma.done [#allocation3], 256
    $region45: #{neural_net_forward.1} parent=1 // pred_fallthru
      _
    %978 = vsyncpa [#allocation3], 1

</llo_original>
